<compile_context>
chip_gen: v6e
topology: v6e:2x2x1
jax: 0.10.0
libtpu: 0.0.40
codegen_flags: <defaults>
</compile_context>

<pallas_src>
import functools
import math

import jax
import jax.numpy as jnp
from jax.experimental import pallas as pl
from jax.experimental.pallas import tpu as pltpu


def _round_up(x, m):
    return ((x + m - 1) // m) * m


def _vmem_budget_bytes():
    """Per-core VMEM budget with headroom for compiler-internal scratch.

    v5e/v6e: 128 MiB physical -> ~96 MiB budget.
    v7x    :  64 MiB per TC   -> ~48 MiB budget (never request all of it).
    """
    cap = 64 * 1024 * 1024
    try:
        info = pltpu.get_tpu_info()
        cap = int(getattr(info, "vmem_capacity_bytes", cap))
    except Exception:
        pass
    return (cap * 3) // 4


def prepare_mlp_weights(w_up, w_gate, w_down, s_u, s_v, *, th=512,
                        compute_dtype=jnp.bfloat16):
    """Fold the learnable scales into the weights and lay them out for the
    kernel.  Call once per parameter set and reuse (`prepared=` argument of
    `mlp_forward`) to avoid re-doing the transpose / scale-fold / cast (and its
    HBM traffic) on every forward call.

    Returns (w_ug, w_dn, th_eff, H_pad):
      w_ug : (D, n_h * 2 * th_eff)  per hidden chunk: [Wup^T*s_u | Wgate^T*s_v*sqrt(D)]
      w_dn : (H_pad, O)             Wdown^T, zero-padded along hidden
    """
    H, D = w_up.shape
    scale = math.sqrt(D)  # Mlp.scale = sqrt(in_features)

    # Scale.forward() == s * (init / scale) with defaults init == scale == 1.0.
    su = s_u.reshape(1, H).astype(jnp.float32)
    sv = s_v.reshape(1, H).astype(jnp.float32)

    wup_eff = w_up.astype(jnp.float32).T * su                  # (D, H)
    wgate_eff = w_gate.astype(jnp.float32).T * (sv * scale)    # (D, H)
    w_dn = w_down.astype(jnp.float32).T                        # (H, O)

    # Hidden chunk size: multiple of 128 so the in-kernel u/v split is
    # lane-aligned.  Zero-pad H up to a multiple of th_eff: padded columns give
    # u = v = 0 -> hidden = 0, and padded Wdown rows are 0, so the result is exact.
    th_eff = min(_round_up(th, 128), _round_up(H, 128))
    H_pad = _round_up(H, th_eff)
    n_h = H_pad // th_eff
    if H_pad != H:
        wup_eff = jnp.pad(wup_eff, ((0, 0), (0, H_pad - H)))
        wgate_eff = jnp.pad(wgate_eff, ((0, 0), (0, H_pad - H)))
        w_dn = jnp.pad(w_dn, ((0, H_pad - H), (0, 0)))

    # Interleave up/gate per hidden chunk -> one fused MXU operand per chunk.
    w_ug = jnp.concatenate(
        [wup_eff.reshape(D, n_h, th_eff), wgate_eff.reshape(D, n_h, th_eff)],
        axis=2).reshape(D, n_h * 2 * th_eff)

    return (w_ug.astype(compute_dtype), w_dn.astype(compute_dtype),
            th_eff, H_pad)


def _mlp_streamed_kernel(x_ref, wug_ref, wdn_ref, o_ref, acc_ref, *, th):
    """grid = (token tiles, hidden chunks); hidden is the reduction axis."""
    h = pl.program_id(1)

    @pl.when(h == 0)
    def _():
        acc_ref[...] = jnp.zeros_like(acc_ref)

    x = x_ref[...]
    uv = jnp.dot(x, wug_ref[...], preferred_element_type=jnp.float32)
    u, v = uv[:, :th], uv[:, th:]
    hidden = u * (v * jax.nn.sigmoid(v))          # u * silu(v), f32 on VPU/EUP
    acc_ref[...] += jnp.dot(hidden.astype(wdn_ref.dtype), wdn_ref[...],
                            preferred_element_type=jnp.float32)

    @pl.when(h == pl.num_programs(1) - 1)
    def _():
        o_ref[...] = acc_ref[...].astype(o_ref.dtype)


def _mlp_resident_kernel(x_ref, wug_ref, wdn_ref, o_ref, *, th, n_h):
    """grid = (token tiles,); full folded weights are VMEM-resident (constant
    index_map -> fetched from HBM once).  Hidden chunks are a static unrolled
    loop so the down-projection of chunk c overlaps the activation of c+1."""
    x = x_ref[...]
    acc = jnp.zeros(o_ref.shape, jnp.float32)
    for c in range(n_h):
        uv = jnp.dot(x, wug_ref[:, 2 * th * c:2 * th * (c + 1)],
                     preferred_element_type=jnp.float32)
        u, v = uv[:, :th], uv[:, th:]
        hidden = u * (v * jax.nn.sigmoid(v))
        acc = acc + jnp.dot(hidden.astype(wdn_ref.dtype),
                            wdn_ref[th * c:th * (c + 1), :],
                            preferred_element_type=jnp.float32)
    o_ref[...] = acc.astype(o_ref.dtype)


def mlp_forward(x, w_up=None, w_gate=None, w_down=None, s_u=None, s_v=None, *,
                prepared=None, tm=512, th=512,
                compute_dtype=jnp.bfloat16, weights_resident=None):
    """x: (B, N, D). w_*: PyTorch nn.Linear layout (out, in). s_*: (1, hidden).

    `prepared`: optional output of prepare_mlp_weights (cache it across calls).
    `weights_resident`: None = auto-select from the VMEM budget.
    """
    B, N, D = x.shape
    M = B * N
    out_dtype = x.dtype

    if prepared is None:
        prepared = prepare_mlp_weights(w_up, w_gate, w_down, s_u, s_v,
                                       th=th, compute_dtype=compute_dtype)
    w_ug, w_dn, th_eff, H_pad = prepared
    n_h = H_pad // th_eff
    O = w_dn.shape[1]
    compute_dtype = w_ug.dtype
    ibytes = jnp.dtype(compute_dtype).itemsize
    obytes = jnp.dtype(out_dtype).itemsize

    x2d = x.reshape(M, D).astype(compute_dtype)

    # --- token tiling: multiple of 16 (bf16 sublane packing); no padding copy
    # of x (partial trailing block is masked by Pallas, garbage rows only land
    # in rows that are never materialized in the (M, O) output).
    tm_eff = min(tm, _round_up(M, 16))
    if M > 16 and pl.cdiv(M, tm_eff) < 2:
        # Keep >= 2 blocks on the parallel axis so both v7x TensorCores
        # (and megacore on v5e/v6e) get work.
        tm_eff = _round_up(pl.cdiv(M, 2), 16)
    tm_eff = max(16, tm_eff)

    budget = _vmem_budget_bytes()

    def _interm_bytes(tm_):
        # f32 uv + hidden intermediates + f32 down-proj partial, per chunk.
        return tm_ * (3 * th_eff + O) * 4

    def _resident_bytes(tm_):
        return (2 * (D * 2 * H_pad + H_pad * O) * ibytes   # full weights (2 bufs)
                + 2 * tm_ * D * ibytes                      # x tiles
                + 2 * tm_ * O * obytes                      # out tiles
                + tm_ * O * 4 + _interm_bytes(tm_))

    def _streamed_bytes(tm_):
        return (2 * (D * 2 * th_eff + th_eff * O) * ibytes  # weight slices (2 bufs)
                + 2 * tm_ * D * ibytes
                + 2 * tm_ * O * obytes
                + tm_ * O * 4                               # f32 accumulator scratch
                + _interm_bytes(tm_))

    if weights_resident is None:
        weights_resident = _resident_bytes(tm_eff) <= budget
    est_fn = _resident_bytes if weights_resident else _streamed_bytes
    while est_fn(tm_eff) > budget and tm_eff > 64:
        tm_eff = max(64, _round_up(tm_eff // 2, 16))

    grid_m = pl.cdiv(M, tm_eff)
    vmem_limit = int(budget)

    # TODO(synk): if a trace shows exposed weight DMA at step boundaries on the
    # streamed path, add pipeline_mode=pl.Buffered(3) to the weight BlockSpecs.

    if weights_resident:
        kernel = functools.partial(_mlp_resident_kernel, th=th_eff, n_h=n_h)
        out2d = pl.pallas_call(
            kernel,
            out_shape=jax.ShapeDtypeStruct((M, O), out_dtype),
            grid_spec=pltpu.PrefetchScalarGridSpec(
                num_scalar_prefetch=0,
                grid=(grid_m,),
                in_specs=[
                    pl.BlockSpec((tm_eff, D), lambda i: (i, 0)),        # x tile
                    pl.BlockSpec((D, 2 * H_pad), lambda i: (0, 0)),     # resident
                    pl.BlockSpec((H_pad, O), lambda i: (0, 0)),         # resident
                ],
                out_specs=pl.BlockSpec((tm_eff, O), lambda i: (i, 0)),
            ),
            compiler_params=pltpu.CompilerParams(
                dimension_semantics=("parallel",),
                vmem_limit_bytes=vmem_limit,
            ),
        )(x2d, w_ug, w_dn)
    else:
        kernel = functools.partial(_mlp_streamed_kernel, th=th_eff)
        out2d = pl.pallas_call(
            kernel,
            out_shape=jax.ShapeDtypeStruct((M, O), out_dtype),
            grid_spec=pltpu.PrefetchScalarGridSpec(
                num_scalar_prefetch=0,
                grid=(grid_m, n_h),
                in_specs=[
                    pl.BlockSpec((tm_eff, D), lambda i, h: (i, 0)),      # x tile
                    pl.BlockSpec((D, 2 * th_eff), lambda i, h: (0, h)),  # up|gate slice
                    pl.BlockSpec((th_eff, O), lambda i, h: (h, 0)),      # down slice
                ],
                out_specs=pl.BlockSpec((tm_eff, O), lambda i, h: (i, 0)),
                scratch_shapes=[pltpu.VMEM((tm_eff, O), jnp.float32)],
            ),
            compiler_params=pltpu.CompilerParams(
                dimension_semantics=("parallel", "arbitrary"),
                vmem_limit_bytes=vmem_limit,
            ),
        )(x2d, w_ug, w_dn)

    return out2d.reshape(B, N, O)


def mlp_reference(x, w_up, w_gate, w_down, s_u, s_v):
    """Pure-JAX reference mirroring the PyTorch forward (f32)."""
    D = x.shape[-1]
    scale = math.sqrt(D)
    u = jnp.einsum("bnd,hd->bnh", x, w_up) * s_u.reshape(-1)
    v = jnp.einsum("bnd,hd->bnh", x, w_gate) * s_v.reshape(-1) * scale
    hidden = u * (v * jax.nn.sigmoid(v))
    return jnp.einsum("bnh,oh->bno", hidden, w_down)


def _max_rel_err(out, ref):
    out = jnp.asarray(out, jnp.float32)
    ref = jnp.asarray(ref, jnp.float32)
    return float(jnp.max(jnp.abs(out - ref)) / (jnp.max(jnp.abs(ref)) + 1e-12))


if __name__ == "__main__":
    key = jax.random.PRNGKey(0)

    # ---------------- tiny shapes (ViT-MLP-like, feature dims small) --------
    B, N = 2, 8
    D, H, O = 32, 64, 32
    kx, ku, kg, kd, kx2, ku2, kg2, kd2 = jax.random.split(key, 8)

    x = jax.random.normal(kx, (B, N, D), dtype=jnp.float32)
    w_up = jax.random.normal(ku, (H, D), dtype=jnp.float32) * 0.05
    w_gate = jax.random.normal(kg, (H, D), dtype=jnp.float32) * 0.05
    w_down = jax.random.normal(kd, (O, H), dtype=jnp.float32) * 0.05
    s_u = jnp.ones((1, H), dtype=jnp.float32)
    s_v = jnp.ones((1, H), dtype=jnp.float32)

    ref = mlp_reference(x, w_up, w_gate, w_down, s_u, s_v)

    # f32 compute path (auto -> weight-resident): tight tolerance.
    out_f32 = jax.block_until_ready(
        mlp_forward(x, w_up, w_gate, w_down, s_u, s_v,
                    compute_dtype=jnp.float32))
    assert out_f32.shape == (B, N, O)
    assert jnp.allclose(out_f32, ref, atol=1e-5, rtol=1e-5), \
        "Pallas (f32, resident) mismatch vs reference"

    # bf16 production path with cached prepared weights, reused across calls.
    prep_bf16 = prepare_mlp_weights(w_up, w_gate, w_down, s_u, s_v,
                                    compute_dtype=jnp.bfloat16)
    out_bf16_a = jax.block_until_ready(mlp_forward(x, prepared=prep_bf16))
    out_bf16_b = jax.block_until_ready(mlp_forward(x, prepared=prep_bf16))
    assert out_bf16_a.shape == (B, N, O)
    # bf16 error is dominated by the hidden->bf16 cast before the down-proj.
    assert _max_rel_err(out_bf16_a, ref) < 5e-2, \
        "Pallas (bf16) mismatch vs reference"
    assert jnp.array_equal(out_bf16_a, out_bf16_b)

    # ------------- medium shapes: partial token block + multi-chunk hidden --
    B2, N2 = 2, 65                  # M = 130 -> partial trailing token block
    D2, H2, O2 = 128, 384, 128
    x2 = jax.random.normal(kx2, (B2, N2, D2), dtype=jnp.float32)
    w_up2 = jax.random.normal(ku2, (H2, D2), dtype=jnp.float32) * 0.05
    w_gate2 = jax.random.normal(kg2, (H2, D2), dtype=jnp.float32) * 0.05
    w_down2 = jax.random.normal(kd2, (O2, H2), dtype=jnp.float32) * 0.05
    s_u2 = jnp.ones((1, H2), dtype=jnp.float32)
    s_v2 = jnp.ones((1, H2), dtype=jnp.float32)
    ref2 = mlp_reference(x2, w_up2, w_gate2, w_down2, s_u2, s_v2)

    # Forced streamed path (grid over hidden chunks, f32 accumulator scratch).
    out2_stream = jax.block_until_ready(
        mlp_forward(x2, w_up2, w_gate2, w_down2, s_u2, s_v2,
                    th=128, compute_dtype=jnp.float32, weights_resident=False))
    assert out2_stream.shape == (B2, N2, O2)
    assert _max_rel_err(out2_stream, ref2) < 2e-2, \
        "Pallas (f32, streamed) mismatch vs reference"

    # Auto path (weight-resident, multi-chunk unrolled loop inside the kernel).
    out2_res = jax.block_until_ready(
        mlp_forward(x2, w_up2, w_gate2, w_down2, s_u2, s_v2,
                    compute_dtype=jnp.float32))
    assert out2_res.shape == (B2, N2, O2)
    assert _max_rel_err(out2_res, ref2) < 2e-2, \
        "Pallas (f32, resident, medium) mismatch vs reference"

    print("KERNEL_OK")
</pallas_src>

<mosaic_0001>
module attributes {stable_mosaic.version = 11 : i64} {
  func.func @_mlp_resident_kernel(%arg0: i32, %arg1: memref<16x32xf32, #tpu.memory_space<vmem>>, %arg2: memref<32x256xf32, #tpu.memory_space<vmem>>, %arg3: memref<128x32xf32, #tpu.memory_space<vmem>>, %arg4: memref<16x32xf32, #tpu.memory_space<vmem>>) attributes {dimension_semantics = [#tpu.dimension_semantics<parallel>], iteration_bounds = array<i64: 1>, scalar_prefetch = 0 : i64, scratch_operands = 0 : i64, tpu.core_type = #tpu.core_type<tc>, window_params = [{transform_indices = @transform_0, window_bounds = array<i64: 16, 32>}, {pipeline_mode = #tpu.pipeline_mode<synchronous>, transform_indices = @transform_1, window_bounds = array<i64: 32, 256>}, {pipeline_mode = #tpu.pipeline_mode<synchronous>, transform_indices = @transform_2, window_bounds = array<i64: 128, 32>}, {transform_indices = @transform_3, window_bounds = array<i64: 16, 32>}]} {
    %c0 = arith.constant 0 : index
    %c0_0 = arith.constant 0 : index
    %0 = vector.load %arg1[%c0, %c0_0] : memref<16x32xf32, #tpu.memory_space<vmem>>, vector<16x32xf32>
    %cst = arith.constant 0.000000e+00 : f32
    %1 = vector.broadcast %cst : f32 to vector<16x32xf32>
    %c0_1 = arith.constant 0 : index
    %c0_2 = arith.constant 0 : index
    %2 = vector.load %arg2[%c0_1, %c0_2] : memref<32x256xf32, #tpu.memory_space<vmem>>, vector<32x256xf32>
    %cst_3 = arith.constant dense<0.000000e+00> : vector<16x256xf32>
    %3 = tpu.matmul %0, %2, %cst_3 {dimension_numbers = #tpu.dot_dimension_numbers<[1], [0], [0], [1], [0, 0, 1, 1], [], []>} : vector<16x32xf32>, vector<32x256xf32>, vector<16x256xf32> -> vector<16x256xf32>
    %4 = vector.extract_strided_slice %3 {offsets = [0, 0], sizes = [16, 128], strides = [1, 1]} : vector<16x256xf32> to vector<16x128xf32>
    %5 = vector.extract_strided_slice %3 {offsets = [0, 128], sizes = [16, 128], strides = [1, 1]} : vector<16x256xf32> to vector<16x128xf32>
    %6 = arith.negf %5 : vector<16x128xf32>
    %7 = math.exp %6 : vector<16x128xf32>
    %cst_4 = arith.constant 1.000000e+00 : f32
    %8 = vector.broadcast %cst_4 : f32 to vector<16x128xf32>
    %9 = arith.addf %8, %7 : vector<16x128xf32>
    %10 = arith.divf %8, %9 : vector<16x128xf32>
    %11 = arith.mulf %5, %10 : vector<16x128xf32>
    %12 = arith.mulf %4, %11 : vector<16x128xf32>
    %c0_5 = arith.constant 0 : index
    %c0_6 = arith.constant 0 : index
    %13 = vector.load %arg3[%c0_5, %c0_6] : memref<128x32xf32, #tpu.memory_space<vmem>>, vector<128x32xf32>
    %cst_7 = arith.constant dense<0.000000e+00> : vector<16x32xf32>
    %14 = tpu.matmul %12, %13, %cst_7 {dimension_numbers = #tpu.dot_dimension_numbers<[1], [0], [0], [1], [0, 0, 1, 1], [], []>} : vector<16x128xf32>, vector<128x32xf32>, vector<16x32xf32> -> vector<16x32xf32>
    %15 = arith.addf %1, %14 : vector<16x32xf32>
    %c0_8 = arith.constant 0 : index
    %c0_9 = arith.constant 0 : index
    %16 = vector.load %arg4[%c0_8, %c0_9] : memref<16x32xf32, #tpu.memory_space<vmem>>, vector<16x32xf32>
    tpu.vector_store %arg4[%c0_8, %c0_9], %15 {strides = array<i32>} : memref<16x32xf32, #tpu.memory_space<vmem>>, vector<16x32xf32>,
    return
  }
  func.func @transform_0(%arg0: i32) -> (i32, i32) {
    %c0_i32 = arith.constant 0 : i32
    %c0_i32_0 = arith.constant 0 : i32
    return %arg0, %c0_i32 : i32, i32
  }
  func.func @transform_1(%arg0: i32) -> (i32, i32) {
    %c0_i32 = arith.constant 0 : i32
    %c0_i32_0 = arith.constant 0 : i32
    %c0_i32_1 = arith.constant 0 : i32
    return %c0_i32, %c0_i32_0 : i32, i32
  }
  func.func @transform_2(%arg0: i32) -> (i32, i32) {
    %c0_i32 = arith.constant 0 : i32
    %c0_i32_0 = arith.constant 0 : i32
    %c0_i32_1 = arith.constant 0 : i32
    return %c0_i32, %c0_i32_0 : i32, i32
  }
  func.func @transform_3(%arg0: i32) -> (i32, i32) {
    %c0_i32 = arith.constant 0 : i32
    %c0_i32_0 = arith.constant 0 : i32
    return %arg0, %c0_i32 : i32, i32
  }
}

</mosaic_0001>

<llo_original>
// kernel: tpu_custom_call.1
$region0: #{tpu_custom_call.1}
  #allocation0 [shape = 'u32[]', space=smem, size = 0x4, offset = 0x4, fixed_abs, tag = 'smem constant byte address 0x4 - core index']
  #allocation1 [shape = 'u32[144,128]{1,0:T(1,128)}', space=vmem, size = 0x12000, scoped, tag = 'internal scratch']
  %s0 = inlined_call_operand.vmem [shape: f32[16,32], index: 0, kind: input, shape index: {}]
  %s1 = inlined_call_operand.vmem [shape: f32[32,256], index: 1, kind: input, shape index: {}]
  %s2 = inlined_call_operand.vmem [shape: f32[128,32], index: 2, kind: input, shape index: {}]
  %s3 = inlined_call_operand.hbm [shape: f32[16,32], index: 3, kind: output, shape index: {}]
  %s4 = sld [smem:[#allocation0]]
  $region22: #{tpu_custom_call.1} parent=0
    _
  %s6 = ssub.s32 1, %s4
  %s7 = scalar_select 0, %s6, %s4
  $region1: #{tpu_custom_call.1} parent=0
    #allocation2 [shape = 'u8[8192]{0}', space=vmem, size = 0x2000, scoped, tag = 'output window, operand 0, single buffered']
    #allocation3 [shape = 's32[1]{0}', space=sflag, size = 0x4, scoped, tag = 'scoped memory for tpu_custom_call.1']
    %8 = vsyncpa [#allocation3], 0
    // Predicated region
    $region2: #{tpu_custom_call.1} parent=1 // pred_check
      _
    $region3: #{tpu_custom_call.1} parent=1 // pred_check_branch
      %10 = sbr.rel (0) target = $region5
    $region4: #{tpu_custom_call.1} parent=1 // pred_region
      _
    $region5: #{tpu_custom_call.1} parent=1 // pred_fallthru
      _
    // Predicated region
    $region6: #{tpu_custom_call.1} parent=1 // pred_check
      _
    $region7: #{tpu_custom_call.1} parent=1 // pred_check_branch
      %12 = sbr.rel (0) target = $region9
    $region8: #{tpu_custom_call.1} parent=1 // pred_region
      _
    $region9: #{tpu_custom_call.1} parent=1 // pred_fallthru
      _
    // Predicated region
    $region10: #{tpu_custom_call.1} parent=1 // pred_check
      _
    $region11: #{tpu_custom_call.1} parent=1 // pred_check_branch
      %14 = sbr.rel (0) target = $region13
    $region12: #{tpu_custom_call.1} parent=1 // pred_region
      _
    $region13: #{tpu_custom_call.1} parent=1 // pred_fallthru
      _
    %v15 = vld [vmem:[%s0] sm:$0xff]
    %v16 = vld [vmem:[%s0 + $0x8] sm:$0xff]
    %v17 = vld [vmem:[%s1] sm:$0xff]
    %v18 = vld [vmem:[%s1 + $0x8] sm:$0xff]
    %v19 = vld [vmem:[%s1 + $0x10] sm:$0xff]
    %v20 = vld [vmem:[%s1 + $0x18] sm:$0xff]
    %v21 = vld [vmem:[%s1 + $0x20] sm:$0xff]
    %v22 = vld [vmem:[%s1 + $0x28] sm:$0xff]
    %v23 = vld [vmem:[%s1 + $0x30] sm:$0xff]
    %v24 = vld [vmem:[%s1 + $0x38] sm:$0xff]
    %vm25 = vcmask 261120
    %v27 = vsel %vm25, %v15, 0
    %v30 = vsel %vm25, %v16, 0
    %32 = vmatprep.subr.mxu0 0.0
    %33 = vmatpush1.msra.mxu0 0.0
    %34 = vmatprep.subr.mxu0 0.0
    %35 = vmatpush1.msra.mxu0 0.0
    %36 = vmatprep.subr.mxu0 0.0
    %37 = vmatpush1.msra.mxu0 0.0
    %38 = vmatprep.subr.mxu0 0.0
    %39 = vmatpush1.msra.mxu0 0.0
    %40 = vmatprep.subr.mxu0 0.0
    %41 = vmatpush1.msra.mxu0 0.0
    %42 = vmatprep.subr.mxu0 0.0
    %43 = vmatpush1.msra.mxu0 0.0
    %44 = vmatprep.subr.mxu0 0.0
    %45 = vmatpush1.msra.mxu0 0.0
    %46 = vmatprep.subr.mxu0 0.0
    %47 = vmatpush1.msra.mxu0 0.0
    %48 = vmatprep.subr.mxu0 0.0
    %49 = vmatpush1.msra.mxu0 0.0
    %50 = vmatprep.subr.mxu0 0.0
    %51 = vmatpush1.msra.mxu0 0.0
    %52 = vmatprep.subr.mxu0 0.0
    %53 = vmatpush1.msra.mxu0 0.0
    %54 = vmatprep.subr.mxu0 0.0
    %55 = vmatpush1.msra.mxu0 0.0
    %56 = vmatprep.subr.mxu0 %v24
    %57 = vmatpush1.msra.mxu0 %v23
    %58 = vmatprep.subr.mxu0 %v22
    %59 = vmatpush1.msra.mxu0 %v21
    %60 = vmatprep.subr.mxu0 %v20
    %61 = vmatpush1.msra.mxu0 %v19
    %62 = vmatprep.subr.mxu0 %v18
    %63 = vmatpush1.msra.mxu0 %v17
    %64 = vmatprep.subr.mxu0 0.0
    %65 = vmatpush2.msra.mxu0 0.0
    %66 = vmatprep.subr.mxu0 0.0
    %67 = vmatpush2.msra.mxu0 0.0
    %68 = vmatprep.subr.mxu0 0.0
    %69 = vmatpush2.msra.mxu0 0.0
    %70 = vmatprep.subr.mxu0 0.0
    %71 = vmatpush2.msra.mxu0 0.0
    %72 = vmatprep.subr.mxu0 0.0
    %73 = vmatpush2.msra.mxu0 0.0
    %74 = vmatprep.subr.mxu0 0.0
    %75 = vmatpush2.msra.mxu0 0.0
    %76 = vmatprep.subr.mxu0 0.0
    %77 = vmatpush2.msra.mxu0 0.0
    %78 = vmatprep.subr.mxu0 0.0
    %79 = vmatpush2.msra.mxu0 0.0
    %80 = vmatprep.subr.mxu0 0.0
    %81 = vmatpush2.msra.mxu0 0.0
    %82 = vmatprep.subr.mxu0 0.0
    %83 = vmatpush2.msra.mxu0 0.0
    %84 = vmatprep.subr.mxu0 0.0
    %85 = vmatpush2.msra.mxu0 0.0
    %86 = vmatprep.subr.mxu0 0.0
    %87 = vmatpush2.msra.mxu0 0.0
    %88 = vmatprep.subr.mxu0 0.0
    %89 = vmatpush2.msra.mxu0 0.0
    %90 = vmatprep.subr.mxu0 0.0
    %91 = vmatpush2.msra.mxu0 0.0
    %92 = vmatprep.subr.mxu0 0.0
    %93 = vmatpush2.msra.mxu0 0.0
    %94 = vmatprep.subr.mxu0 0.0
    %95 = vmatpush2.msra.mxu0 0.0
    %96 = vmatprep.mubr.f32.mxu0 0.0
    %97 = vmatmul.mubr.f32.gmra.mxu0 %v27
    %v98 = vpop.f32.mrf.mxu0
    %v99 = vadd.f32 0.0, %v98
    %v100 = vpop.f32.mrf.mxu0
    %v101 = vadd.f32 0.0, %v100
    %102 = vmatprep.mubr.f32.mxu0 0.0
    %103 = vmatmul.mubr.f32.gmra.mxu0 %v30
    %v104 = vpop.f32.mrf.mxu0
    %v105 = vadd.f32 0.0, %v104
    %v106 = vpop.f32.mrf.mxu0
    %v107 = vadd.f32 0.0, %v106
    %108 = vdwg.mxu0
    %v109 = vxor.u32 %v101, 2147483648
    %v110 = vxor.u32 %v107, 2147483648
    %v111 = vmul.f32 %v109, 1.442695
    %v112 = vpow.pop %v111
    %v113 = vmul.f32 %v110, 1.442695
    %v114 = vpow.pop %v113
    %v115 = vadd.f32 %v112, 1.0
    %v116 = vadd.f32 %v114, 1.0
    %v117 = vrcp.pop %v115
    %v118 = vmul.f32 1.0, %v117
    %v119 = vrcp.pop %v116
    %v120 = vmul.f32 1.0, %v119
    %v121 = vmul.f32 %v101, %v118
    %v122 = vmul.f32 %v107, %v120
    %v123 = vmul.f32 %v99, %v121
    %v124 = vmul.f32 %v105, %v122
    %v125 = vld [vmem:[%s2] sm:$0xff]
    %v126 = vld [vmem:[%s2 + $0x8] sm:$0xff]
    %v127 = vld [vmem:[%s2 + $0x10] sm:$0xff]
    %v128 = vld [vmem:[%s2 + $0x18] sm:$0xff]
    %v129 = vld [vmem:[%s2 + $0x20] sm:$0xff]
    %v130 = vld [vmem:[%s2 + $0x28] sm:$0xff]
    %v131 = vld [vmem:[%s2 + $0x30] sm:$0xff]
    %v132 = vld [vmem:[%s2 + $0x38] sm:$0xff]
    %v133 = vld [vmem:[%s2 + $0x40] sm:$0xff]
    %v134 = vld [vmem:[%s2 + $0x48] sm:$0xff]
    %v135 = vld [vmem:[%s2 + $0x50] sm:$0xff]
    %v136 = vld [vmem:[%s2 + $0x58] sm:$0xff]
    %v137 = vld [vmem:[%s2 + $0x60] sm:$0xff]
    %v138 = vld [vmem:[%s2 + $0x68] sm:$0xff]
    %v139 = vld [vmem:[%s2 + $0x70] sm:$0xff]
    %v140 = vld [vmem:[%s2 + $0x78] sm:$0xff]
    %141 = vmatprep.subr.mxu0 0.0
    %142 = vmatpush1.msra.mxu0 %v140
    %143 = vmatprep.subr.mxu0 0.0
    %144 = vmatpush1.msra.mxu0 %v139
    %145 = vmatprep.subr.mxu0 0.0
    %146 = vmatpush1.msra.mxu0 %v138
    %147 = vmatprep.subr.mxu0 0.0
    %148 = vmatpush1.msra.mxu0 %v137
    %149 = vmatprep.subr.mxu0 0.0
    %150 = vmatpush1.msra.mxu0 %v136
    %151 = vmatprep.subr.mxu0 0.0
    %152 = vmatpush1.msra.mxu0 %v135
    %153 = vmatprep.subr.mxu0 0.0
    %154 = vmatpush1.msra.mxu0 %v134
    %155 = vmatprep.subr.mxu0 0.0
    %156 = vmatpush1.msra.mxu0 %v133
    %157 = vmatprep.subr.mxu0 0.0
    %158 = vmatpush1.msra.mxu0 %v132
    %159 = vmatprep.subr.mxu0 0.0
    %160 = vmatpush1.msra.mxu0 %v131
    %161 = vmatprep.subr.mxu0 0.0
    %162 = vmatpush1.msra.mxu0 %v130
    %163 = vmatprep.subr.mxu0 0.0
    %164 = vmatpush1.msra.mxu0 %v129
    %165 = vmatprep.subr.mxu0 0.0
    %166 = vmatpush1.msra.mxu0 %v128
    %167 = vmatprep.subr.mxu0 0.0
    %168 = vmatpush1.msra.mxu0 %v127
    %169 = vmatprep.subr.mxu0 0.0
    %170 = vmatpush1.msra.mxu0 %v126
    %171 = vmatprep.subr.mxu0 0.0
    %172 = vmatpush1.msra.mxu0 %v125
    %173 = vmatprep.subr.mxu0 0.0
    %174 = vmatpush2.msra.mxu0 0.0
    %175 = vmatprep.subr.mxu0 0.0
    %176 = vmatpush2.msra.mxu0 0.0
    %177 = vmatprep.subr.mxu0 0.0
    %178 = vmatpush2.msra.mxu0 0.0
    %179 = vmatprep.subr.mxu0 0.0
    %180 = vmatpush2.msra.mxu0 0.0
    %181 = vmatprep.subr.mxu0 0.0
    %182 = vmatpush2.msra.mxu0 0.0
    %183 = vmatprep.subr.mxu0 0.0
    %184 = vmatpush2.msra.mxu0 0.0
    %185 = vmatprep.subr.mxu0 0.0
    %186 = vmatpush2.msra.mxu0 0.0
    %187 = vmatprep.subr.mxu0 0.0
    %188 = vmatpush2.msra.mxu0 0.0
    %189 = vmatprep.subr.mxu0 0.0
    %190 = vmatpush2.msra.mxu0 0.0
    %191 = vmatprep.subr.mxu0 0.0
    %192 = vmatpush2.msra.mxu0 0.0
    %193 = vmatprep.subr.mxu0 0.0
    %194 = vmatpush2.msra.mxu0 0.0
    %195 = vmatprep.subr.mxu0 0.0
    %196 = vmatpush2.msra.mxu0 0.0
    %197 = vmatprep.subr.mxu0 0.0
    %198 = vmatpush2.msra.mxu0 0.0
    %199 = vmatprep.subr.mxu0 0.0
    %200 = vmatpush2.msra.mxu0 0.0
    %201 = vmatprep.subr.mxu0 0.0
    %202 = vmatpush2.msra.mxu0 0.0
    %203 = vmatprep.subr.mxu0 0.0
    %204 = vmatpush2.msra.mxu0 0.0
    %205 = vmatprep.mubr.f32.mxu0 0.0
    %206 = vmatmul.mubr.f32.gmra.mxu0 %v123
    %v207 = vpop.f32.mrf.mxu0
    %v208 = vadd.f32 0.0, %v207
    %v209 = vpop.f32.mrf.mxu0
    %210 = vmatprep.mubr.f32.mxu0 0.0
    %211 = vmatmul.mubr.f32.gmra.mxu0 %v124
    %v212 = vpop.f32.mrf.mxu0
    %v213 = vadd.f32 0.0, %v212
    %v214 = vpop.f32.mrf.mxu0
    %215 = vdwg.mxu0
    %216 = vst.msk [vmem:[#allocation2] sm:$0xff] %vm25, %v208
    %217 = vst.msk [vmem:[#allocation2 + $0x8] sm:$0xff] %vm25, %v213
    // Predicated region
    $region14: #{tpu_custom_call.1} parent=1 // pred_check
      _
    $region15: #{tpu_custom_call.1} parent=1 // pred_check_branch
      %219 = sbr.rel (0) target = $region17
    $region16: #{tpu_custom_call.1} parent=1 // pred_region
      %s221 = ssub.s32 256, 256
      %222 = vsyncadd [#allocation3], %s221
      %s223 = sshll.u32 [#allocation2], 4
      %s224 = int_to_ptr.vmem [resolvable:$true] %s223
      %229 = dma.vmem_to_hbm [thread:$0]  %s224, 256, %s3, [#allocation3], 128, 128, 8
    $region17: #{tpu_custom_call.1} parent=1 // pred_fallthru
      _
    // Predicated region
    $region18: #{tpu_custom_call.1} parent=1 // pred_check
      _
    $region19: #{tpu_custom_call.1} parent=1 // pred_check_branch
      %231 = sbr.rel (0) target = $region21
    $region20: #{tpu_custom_call.1} parent=1 // pred_region
      %232 = dma.done [#allocation3], 256
    $region21: #{tpu_custom_call.1} parent=1 // pred_fallthru
      _
    %233 = vsyncpa [#allocation3], 1

</llo_original>
